<compile_context>
chip_gen: v7x
topology: tpu7x:2x2x1
jax: 0.10.0
libtpu: 0.0.40
codegen_flags: <defaults>
</compile_context>

<pallas_src>
import functools

import jax
import jax.numpy as jnp
from jax.experimental import pallas as pl
from jax.experimental.pallas import tpu as pltpu

TEMPERATURE = 2.0       # module default: temperature=2
SMOOTH_L1_BETA = 1.0    # TODO(synk): stands in for CFG.smooth_l1_beta (config unavailable)
EPS = 1e-7              # eps used in the torch forward

_SUB = 8                # anchor sub-group (= sublane count); bounds the [8, n, kb] slab


def _rnc_loss_kernel(sq_all_ref, feat_t_ref, rot_t_ref, feat_ref, rot_ref, o_ref, *,
                     n, tile_i, kb, inv_t, beta, half_over_beta, half_beta, eps):
    np_ = sq_all_ref.shape[1]          # padded sample count (j / k axis, lanes)
    d_rot = rot_t_ref.shape[0]

    t = pl.program_id(0)
    i0 = t * tile_i                    # first global anchor row of this tile

    feat_tile = feat_ref[...].astype(jnp.float32)     # [ti, d_feat]  (blocked)
    rot_tile = rot_ref[...].astype(jnp.float32)       # [ti, d_rot]   (blocked)
    feat_t = feat_t_ref[...].astype(jnp.float32)      # [d_feat, np_] (resident)
    rot_t = rot_t_ref[...].astype(jnp.float32)        # [d_rot,  np_] (resident)
    sq_all = sq_all_ref[...].astype(jnp.float32)      # [1, np_]      (resident)

    # Global anchor index i (sublanes) vs. "other" index j/k (lanes).
    row_g = i0 + jax.lax.broadcasted_iota(jnp.int32, (tile_i, np_), 0)
    col = jax.lax.broadcasted_iota(jnp.int32, (tile_i, np_), 1)
    col_valid = col < n                                # padded columns excluded
    off_diag = (row_g != col) & col_valid              # valid k != i (and j != i)
    term_mask = off_diag & (row_g < n)                 # padded anchor rows excluded

    # ---- FeatureSimilarity('l2') via Gram matrix on the MXU -----------------
    gram = jnp.dot(feat_tile, feat_t, preferred_element_type=jnp.float32,
                   precision=jax.lax.Precision.HIGHEST)          # [ti, np_]
    sq_tile = jnp.sum(feat_tile * feat_tile, axis=-1, keepdims=True)   # [ti, 1]
    d2 = sq_tile + sq_all - 2.0 * gram
    d2 = jnp.where(row_g == col, 0.0, jnp.maximum(d2, 0.0))  # clamp + exact-0 diag
    logits = jnp.sqrt(d2) * (-inv_t)                                  # [ti, np_]

    # ---- LabelDifference_rot('l1'): smooth-L1, lane-dense per label dim -----
    acc = jnp.zeros((tile_i, np_), jnp.float32)
    for d in range(d_rot):                                    # static, unrolled
        diff = rot_tile[:, d:d + 1] - rot_t[d:d + 1, :]               # [ti, np_]
        ad = jnp.abs(diff)
        acc = acc + jnp.where(ad < beta, diff * diff * half_over_beta,
                              ad - half_beta)
    rot_diff = acc * (1.0 / d_rot)                                    # [ti, np_]

    # ---- row-max shift and exp, exactly as in the torch code ----------------
    row_max = jnp.max(jnp.where(col_valid, logits, -jnp.inf), axis=1, keepdims=True)
    logits = logits - row_max
    exp_masked = jnp.where(off_diag, jnp.exp(logits), 0.0)    # exclude k == i / pad

    # ---- denom[i, j] = sum_{k != i} [rd[i,j] <= rd[i,k]] * exp_logits[i,k] --
    # Fused VPU compare x weight x lane-reduce, k-blocked, 8 anchors at a time:
    # the largest transient is [8, np_, kb] f32, independent of tile_i and n^2.
    partial = jnp.float32(0.0)
    for a0 in range(0, tile_i, _SUB):                         # static sub-groups
        rd_s = rot_diff[a0:a0 + _SUB]                                  # [8, np_]
        ex_s = exp_masked[a0:a0 + _SUB]                                # [8, np_]
        denom = jnp.zeros((_SUB, np_), jnp.float32)
        for k0 in range(0, np_, kb):                          # static k blocks
            kc = min(kb, np_ - k0)
            rd_k = rd_s[:, k0:k0 + kc]                                 # [8, kc]
            ex_k = ex_s[:, k0:k0 + kc]                                 # [8, kc]
            w = jnp.where(rd_s[:, :, None] <= rd_k[:, None, :],
                          ex_k[:, None, :], 0.0)                       # [8, np_, kc]
            denom = denom + jnp.sum(w, axis=-1)                        # [8, np_]
        term = jnp.where(term_mask[a0:a0 + _SUB],
                         logits[a0:a0 + _SUB] - jnp.log(denom + eps), 0.0)
        partial = partial + jnp.sum(term)

    # Lane-dense per-tile partial-sum block (unmasked store); wrapper reduces.
    o_ref[...] = jnp.broadcast_to(partial, o_ref.shape)


def _pick_tiles(n, slab_budget_bytes=4 << 20):
    """Anchor tile (multiple of 8), padded n, and k-block width.

    The k-block width is sized so the [8, n_pad, kb] f32 transient of the fused
    denominator (plus its broadcast/compare intermediates) stays well inside
    scoped VMEM on every generation.
    """
    n8 = max(8, ((n + 7) // 8) * 8)
    tile_i = min(64, n8)                                   # multiple of 8
    np_ = ((n8 + tile_i - 1) // tile_i) * tile_i
    kb = 128
    for cand in (512, 256, 128):
        if _SUB * np_ * cand * 4 <= slab_budget_bytes:
            kb = cand
            break
    kb = min(kb, np_)
    return tile_i, np_, kb


def _vmem_limit_bytes():
    """Generation-aware scoped-VMEM limit (None -> compiler default)."""
    try:
        kind = jax.devices()[0].device_kind.lower()
    except Exception:
        return None
    if "v7" in kind:
        return 48 << 20          # 64 MiB physical: leave headroom
    if any(v in kind for v in ("v4", "v5", "v6")):
        return 96 << 20          # 128 MiB physical
    return None


def rnc_loss_rot_sym(rot_feat, rot, temperature=TEMPERATURE,
                     beta=SMOOTH_L1_BETA, eps=EPS):
    rot_feat = jnp.asarray(rot_feat, jnp.float32)
    rot = jnp.asarray(rot, jnp.float32)
    n, d_feat = rot_feat.shape
    d_rot = rot.shape[1]

    tile_i, np_, kb = _pick_tiles(n)
    num_tiles = np_ // tile_i
    pad = np_ - n

    feat_p = jnp.pad(rot_feat, ((0, pad), (0, 0))) if pad else rot_feat
    rot_p = jnp.pad(rot, ((0, pad), (0, 0))) if pad else rot
    # Hoisted once in the wrapper (not redone every grid step).
    feat_t = feat_p.T                                        # [d_feat, np_]
    rot_t = rot_p.T                                          # [d_rot,  np_]
    sq_all = jnp.sum(feat_p * feat_p, axis=-1)[None, :]      # [1, np_]

    kernel = functools.partial(
        _rnc_loss_kernel, n=n, tile_i=tile_i, kb=kb, inv_t=1.0 / temperature,
        beta=beta, half_over_beta=0.5 / beta, half_beta=0.5 * beta, eps=eps)

    cost = pl.CostEstimate(
        flops=int(6 * np_ * np_ * d_feat + 4 * np_ ** 3
                  + 8 * np_ * np_ * d_rot + 24 * np_ * np_),
        transcendentals=int(3 * np_ * np_),                  # exp, log, sqrt / pair
        bytes_accessed=int(4 * (2 * np_ * d_feat + 2 * np_ * d_rot + np_
                                + num_tiles * 8 * 128)))

    partials = pl.pallas_call(
        kernel,
        out_shape=jax.ShapeDtypeStruct((num_tiles, 8, 128), jnp.float32),
        grid_spec=pltpu.PrefetchScalarGridSpec(
            num_scalar_prefetch=0,
            grid=(num_tiles,),
            in_specs=[
                # Resident (constant block index => fetched once).
                pl.BlockSpec((1, np_), lambda t: (0, 0)),          # sq_all
                pl.BlockSpec((d_feat, np_), lambda t: (0, 0)),     # feat.T
                pl.BlockSpec((d_rot, np_), lambda t: (0, 0)),      # rot.T
                # Per-tile anchor rows (auto-pipelined).
                pl.BlockSpec((tile_i, d_feat), lambda t: (t, 0)),  # feat tile
                pl.BlockSpec((tile_i, d_rot), lambda t: (t, 0)),   # rot tile
            ],
            out_specs=pl.BlockSpec((1, 8, 128), lambda t: (t, 0, 0)),
        ),
        compiler_params=pltpu.CompilerParams(
            dimension_semantics=("parallel",),       # anchor axis -> megacore
            vmem_limit_bytes=_vmem_limit_bytes()),
        cost_estimate=cost,
    )(sq_all, feat_t, rot_t, feat_p, rot_p)

    loss = -jnp.sum(partials[:, 0, 0]) / (n * (n - 1))
    # TODO(synk): the torch module returns Python None when the loss is NaN/Inf;
    # that data-dependent branch cannot live in a jitted kernel, so callers
    # should check jnp.isfinite on the returned scalar instead.
    return loss


def _reference(rot_feat, rot, temperature=TEMPERATURE,
               beta=SMOOTH_L1_BETA, eps=EPS):
    """Pure-JAX re-implementation of the torch forward (for verification)."""
    n = rot_feat.shape[0]
    dist = jnp.linalg.norm(rot_feat[:, None, :] - rot_feat[None, :, :], axis=-1)
    logits = -dist / temperature
    d = rot[:, None, :] - rot[None, :, :]
    ad = jnp.abs(d)
    sl1 = jnp.where(ad < beta, 0.5 * d * d / beta, ad - 0.5 * beta)
    rot_diff = jnp.mean(sl1, axis=-1)
    logits = logits - jnp.max(logits, axis=1, keepdims=True)
    exp_logits = jnp.exp(logits)
    off = ~jnp.eye(n, dtype=bool)
    cmp = rot_diff[:, :, None] <= rot_diff[:, None, :]
    keep = cmp & off[:, None, :]
    denom = jnp.sum(jnp.where(keep, exp_logits[:, None, :], 0.0), axis=-1)
    term = jnp.where(off, logits - jnp.log(denom + eps), 0.0)
    return -jnp.sum(term) / (n * (n - 1))


if __name__ == "__main__":
    key = jax.random.PRNGKey(0)
    d_feat, d_rot = 32, 6

    for case_i, n in enumerate((8, 20)):   # 20 exercises padding + masking path
        k1, k2 = jax.random.split(jax.random.fold_in(key, case_i))
        rot_feat = jax.random.normal(k1, (n, d_feat), dtype=jnp.float32)
        rot = jax.random.normal(k2, (n, d_rot), dtype=jnp.float32)

        loss = jax.block_until_ready(rnc_loss_rot_sym(rot_feat, rot))
        ref = jax.block_until_ready(_reference(rot_feat, rot))

        assert bool(jnp.isfinite(loss)), "loss is not finite"
        tol = 1e-3 * max(1.0, abs(float(ref)))
        assert abs(float(loss) - float(ref)) < tol, (n, float(loss), float(ref))

    print("KERNEL_OK")
</pallas_src>

<mosaic_0001>
module attributes {stable_mosaic.version = 11 : i64} {
  func.func @_rnc_loss_kernel(%arg0: i32, %arg1: memref<1x8xf32, #tpu.memory_space<vmem>>, %arg2: memref<32x8xf32, #tpu.memory_space<vmem>>, %arg3: memref<6x8xf32, #tpu.memory_space<vmem>>, %arg4: memref<8x32xf32, #tpu.memory_space<vmem>>, %arg5: memref<8x6xf32, #tpu.memory_space<vmem>>, %arg6: memref<1x8x128xf32, #tpu.memory_space<vmem>>) attributes {dimension_semantics = [#tpu.dimension_semantics<parallel>], iteration_bounds = array<i64: 1>, scalar_prefetch = 0 : i64, scratch_operands = 0 : i64, tpu.core_type = #tpu.core_type<tc>, window_params = [{pipeline_mode = #tpu.pipeline_mode<synchronous>, transform_indices = @transform_0, window_bounds = array<i64: 1, 8>}, {pipeline_mode = #tpu.pipeline_mode<synchronous>, transform_indices = @transform_1, window_bounds = array<i64: 32, 8>}, {pipeline_mode = #tpu.pipeline_mode<synchronous>, transform_indices = @transform_2, window_bounds = array<i64: 6, 8>}, {transform_indices = @transform_3, window_bounds = array<i64: 8, 32>}, {transform_indices = @transform_4, window_bounds = array<i64: 8, 6>}, {transform_indices = @transform_5, window_bounds = array<i64: 1, 8, 128>}]} {
    %c8_i32 = arith.constant 8 : i32
    %0 = arith.muli %arg0, %c8_i32 : i32
    %c0 = arith.constant 0 : index
    %c0_0 = arith.constant 0 : index
    %1 = vector.load %arg4[%c0, %c0_0] : memref<8x32xf32, #tpu.memory_space<vmem>>, vector<8x32xf32>
    %c0_1 = arith.constant 0 : index
    %c0_2 = arith.constant 0 : index
    %2 = vector.load %arg5[%c0_1, %c0_2] : memref<8x6xf32, #tpu.memory_space<vmem>>, vector<8x6xf32>
    %c0_3 = arith.constant 0 : index
    %c0_4 = arith.constant 0 : index
    %3 = vector.load %arg2[%c0_3, %c0_4] : memref<32x8xf32, #tpu.memory_space<vmem>>, vector<32x8xf32>
    %c0_5 = arith.constant 0 : index
    %c0_6 = arith.constant 0 : index
    %4 = vector.load %arg3[%c0_5, %c0_6] : memref<6x8xf32, #tpu.memory_space<vmem>>, vector<6x8xf32>
    %c0_7 = arith.constant 0 : index
    %c0_8 = arith.constant 0 : index
    %5 = vector.load %arg1[%c0_7, %c0_8] : memref<1x8xf32, #tpu.memory_space<vmem>>, vector<1x8xf32>
    %6 = tpu.iota {dimensions = array<i32: 0>} : vector<8x8xi32>
    %7 = vector.broadcast %0 : i32 to vector<8x8xi32>
    %8 = arith.addi %7, %6 : vector<8x8xi32>
    %9 = tpu.iota {dimensions = array<i32: 1>} : vector<8x8xi32>
    %c8_i32_9 = arith.constant 8 : i32
    %10 = vector.broadcast %c8_i32_9 : i32 to vector<8x8xi32>
    %11 = arith.cmpi slt, %9, %10 : vector<8x8xi32>
    %12 = arith.cmpi ne, %8, %9 : vector<8x8xi32>
    %13 = arith.andi %12, %11 : vector<8x8xi1>
    %c8_i32_10 = arith.constant 8 : i32
    %14 = vector.broadcast %c8_i32_10 : i32 to vector<8x8xi32>
    %15 = arith.cmpi slt, %8, %14 : vector<8x8xi32>
    %16 = arith.andi %13, %15 : vector<8x8xi1>
    %cst = arith.constant dense<0.000000e+00> : vector<8x8xf32>
    %17 = tpu.matmul %1, %3, %cst {dimension_numbers = #tpu.dot_dimension_numbers<[1], [0], [0], [1], [0, 0, 1, 1], [], []>, precision = #tpu.contract_precision<fp32>} : vector<8x32xf32>, vector<32x8xf32>, vector<8x8xf32> -> vector<8x8xf32>
    %18 = arith.mulf %1, %1 : vector<8x32xf32>
    %cst_11 = arith.constant dense<0.000000e+00> : vector<8xf32>
    %19 = vector.multi_reduction <add>, %18, %cst_11 [1] : vector<8x32xf32> to vector<8xf32>
    %20 = vector.shape_cast %19 : vector<8xf32> to vector<8x1xf32>
    %21 = vector.broadcast %20 : vector<8x1xf32> to vector<8x8xf32>
    %22 = vector.broadcast %5 : vector<1x8xf32> to vector<8x8xf32>
    %23 = arith.addf %21, %22 : vector<8x8xf32>
    %cst_12 = arith.constant 2.000000e+00 : f32
    %24 = vector.broadcast %cst_12 : f32 to vector<8x8xf32>
    %25 = arith.mulf %24, %17 : vector<8x8xf32>
    %26 = arith.subf %23, %25 : vector<8x8xf32>
    %27 = arith.cmpi eq, %8, %9 : vector<8x8xi32>
    %cst_13 = arith.constant 0.000000e+00 : f32
    %28 = vector.broadcast %cst_13 : f32 to vector<8x8xf32>
    %29 = arith.maximumf %26, %28 : vector<8x8xf32>
    %cst_14 = arith.constant 0.000000e+00 : f32
    %30 = vector.broadcast %cst_14 : f32 to vector<8x8xf32>
    %31 = arith.select %27, %30, %29 : vector<8x8xi1>, vector<8x8xf32>
    %32 = math.sqrt %31 : vector<8x8xf32>
    %cst_15 = arith.constant -5.000000e-01 : f32
    %33 = vector.broadcast %cst_15 : f32 to vector<8x8xf32>
    %34 = arith.mulf %32, %33 : vector<8x8xf32>
    %cst_16 = arith.constant 0.000000e+00 : f32
    %35 = vector.broadcast %cst_16 : f32 to vector<8x8xf32>
    %36 = vector.extract_strided_slice %2 {offsets = [0, 0], sizes = [8, 1], strides = [1, 1]} : vector<8x6xf32> to vector<8x1xf32>
    %37 = vector.extract_strided_slice %4 {offsets = [0, 0], sizes = [1, 8], strides = [1, 1]} : vector<6x8xf32> to vector<1x8xf32>
    %38 = vector.broadcast %36 : vector<8x1xf32> to vector<8x8xf32>
    %39 = vector.broadcast %37 : vector<1x8xf32> to vector<8x8xf32>
    %40 = arith.subf %38, %39 : vector<8x8xf32>
    %41 = math.absf %40 : vector<8x8xf32>
    %cst_17 = arith.constant 1.000000e+00 : f32
    %42 = vector.broadcast %cst_17 : f32 to vector<8x8xf32>
    %43 = arith.cmpf olt, %41, %42 : vector<8x8xf32>
    %44 = arith.mulf %40, %40 : vector<8x8xf32>
    %cst_18 = arith.constant 5.000000e-01 : f32
    %45 = vector.broadcast %cst_18 : f32 to vector<8x8xf32>
    %46 = arith.mulf %44, %45 : vector<8x8xf32>
    %cst_19 = arith.constant 5.000000e-01 : f32
    %47 = vector.broadcast %cst_19 : f32 to vector<8x8xf32>
    %48 = arith.subf %41, %47 : vector<8x8xf32>
    %49 = arith.select %43, %46, %48 : vector<8x8xi1>, vector<8x8xf32>
    %50 = arith.addf %35, %49 : vector<8x8xf32>
    %51 = vector.extract_strided_slice %2 {offsets = [0, 1], sizes = [8, 1], strides = [1, 1]} : vector<8x6xf32> to vector<8x1xf32>
    %52 = vector.extract_strided_slice %4 {offsets = [1, 0], sizes = [1, 8], strides = [1, 1]} : vector<6x8xf32> to vector<1x8xf32>
    %53 = vector.broadcast %51 : vector<8x1xf32> to vector<8x8xf32>
    %54 = vector.broadcast %52 : vector<1x8xf32> to vector<8x8xf32>
    %55 = arith.subf %53, %54 : vector<8x8xf32>
    %56 = math.absf %55 : vector<8x8xf32>
    %cst_20 = arith.constant 1.000000e+00 : f32
    %57 = vector.broadcast %cst_20 : f32 to vector<8x8xf32>
    %58 = arith.cmpf olt, %56, %57 : vector<8x8xf32>
    %59 = arith.mulf %55, %55 : vector<8x8xf32>
    %cst_21 = arith.constant 5.000000e-01 : f32
    %60 = vector.broadcast %cst_21 : f32 to vector<8x8xf32>
    %61 = arith.mulf %59, %60 : vector<8x8xf32>
    %cst_22 = arith.constant 5.000000e-01 : f32
    %62 = vector.broadcast %cst_22 : f32 to vector<8x8xf32>
    %63 = arith.subf %56, %62 : vector<8x8xf32>
    %64 = arith.select %58, %61, %63 : vector<8x8xi1>, vector<8x8xf32>
    %65 = arith.addf %50, %64 : vector<8x8xf32>
    %66 = vector.extract_strided_slice %2 {offsets = [0, 2], sizes = [8, 1], strides = [1, 1]} : vector<8x6xf32> to vector<8x1xf32>
    %67 = vector.extract_strided_slice %4 {offsets = [2, 0], sizes = [1, 8], strides = [1, 1]} : vector<6x8xf32> to vector<1x8xf32>
    %68 = vector.broadcast %66 : vector<8x1xf32> to vector<8x8xf32>
    %69 = vector.broadcast %67 : vector<1x8xf32> to vector<8x8xf32>
    %70 = arith.subf %68, %69 : vector<8x8xf32>
    %71 = math.absf %70 : vector<8x8xf32>
    %cst_23 = arith.constant 1.000000e+00 : f32
    %72 = vector.broadcast %cst_23 : f32 to vector<8x8xf32>
    %73 = arith.cmpf olt, %71, %72 : vector<8x8xf32>
    %74 = arith.mulf %70, %70 : vector<8x8xf32>
    %cst_24 = arith.constant 5.000000e-01 : f32
    %75 = vector.broadcast %cst_24 : f32 to vector<8x8xf32>
    %76 = arith.mulf %74, %75 : vector<8x8xf32>
    %cst_25 = arith.constant 5.000000e-01 : f32
    %77 = vector.broadcast %cst_25 : f32 to vector<8x8xf32>
    %78 = arith.subf %71, %77 : vector<8x8xf32>
    %79 = arith.select %73, %76, %78 : vector<8x8xi1>, vector<8x8xf32>
    %80 = arith.addf %65, %79 : vector<8x8xf32>
    %81 = vector.extract_strided_slice %2 {offsets = [0, 3], sizes = [8, 1], strides = [1, 1]} : vector<8x6xf32> to vector<8x1xf32>
    %82 = vector.extract_strided_slice %4 {offsets = [3, 0], sizes = [1, 8], strides = [1, 1]} : vector<6x8xf32> to vector<1x8xf32>
    %83 = vector.broadcast %81 : vector<8x1xf32> to vector<8x8xf32>
    %84 = vector.broadcast %82 : vector<1x8xf32> to vector<8x8xf32>
    %85 = arith.subf %83, %84 : vector<8x8xf32>
    %86 = math.absf %85 : vector<8x8xf32>
    %cst_26 = arith.constant 1.000000e+00 : f32
    %87 = vector.broadcast %cst_26 : f32 to vector<8x8xf32>
    %88 = arith.cmpf olt, %86, %87 : vector<8x8xf32>
    %89 = arith.mulf %85, %85 : vector<8x8xf32>
    %cst_27 = arith.constant 5.000000e-01 : f32
    %90 = vector.broadcast %cst_27 : f32 to vector<8x8xf32>
    %91 = arith.mulf %89, %90 : vector<8x8xf32>
    %cst_28 = arith.constant 5.000000e-01 : f32
    %92 = vector.broadcast %cst_28 : f32 to vector<8x8xf32>
    %93 = arith.subf %86, %92 : vector<8x8xf32>
    %94 = arith.select %88, %91, %93 : vector<8x8xi1>, vector<8x8xf32>
    %95 = arith.addf %80, %94 : vector<8x8xf32>
    %96 = vector.extract_strided_slice %2 {offsets = [0, 4], sizes = [8, 1], strides = [1, 1]} : vector<8x6xf32> to vector<8x1xf32>
    %97 = vector.extract_strided_slice %4 {offsets = [4, 0], sizes = [1, 8], strides = [1, 1]} : vector<6x8xf32> to vector<1x8xf32>
    %98 = vector.broadcast %96 : vector<8x1xf32> to vector<8x8xf32>
    %99 = vector.broadcast %97 : vector<1x8xf32> to vector<8x8xf32>
    %100 = arith.subf %98, %99 : vector<8x8xf32>
    %101 = math.absf %100 : vector<8x8xf32>
    %cst_29 = arith.constant 1.000000e+00 : f32
    %102 = vector.broadcast %cst_29 : f32 to vector<8x8xf32>
    %103 = arith.cmpf olt, %101, %102 : vector<8x8xf32>
    %104 = arith.mulf %100, %100 : vector<8x8xf32>
    %cst_30 = arith.constant 5.000000e-01 : f32
    %105 = vector.broadcast %cst_30 : f32 to vector<8x8xf32>
    %106 = arith.mulf %104, %105 : vector<8x8xf32>
    %cst_31 = arith.constant 5.000000e-01 : f32
    %107 = vector.broadcast %cst_31 : f32 to vector<8x8xf32>
    %108 = arith.subf %101, %107 : vector<8x8xf32>
    %109 = arith.select %103, %106, %108 : vector<8x8xi1>, vector<8x8xf32>
    %110 = arith.addf %95, %109 : vector<8x8xf32>
    %111 = vector.extract_strided_slice %2 {offsets = [0, 5], sizes = [8, 1], strides = [1, 1]} : vector<8x6xf32> to vector<8x1xf32>
    %112 = vector.extract_strided_slice %4 {offsets = [5, 0], sizes = [1, 8], strides = [1, 1]} : vector<6x8xf32> to vector<1x8xf32>
    %113 = vector.broadcast %111 : vector<8x1xf32> to vector<8x8xf32>
    %114 = vector.broadcast %112 : vector<1x8xf32> to vector<8x8xf32>
    %115 = arith.subf %113, %114 : vector<8x8xf32>
    %116 = math.absf %115 : vector<8x8xf32>
    %cst_32 = arith.constant 1.000000e+00 : f32
    %117 = vector.broadcast %cst_32 : f32 to vector<8x8xf32>
    %118 = arith.cmpf olt, %116, %117 : vector<8x8xf32>
    %119 = arith.mulf %115, %115 : vector<8x8xf32>
    %cst_33 = arith.constant 5.000000e-01 : f32
    %120 = vector.broadcast %cst_33 : f32 to vector<8x8xf32>
    %121 = arith.mulf %119, %120 : vector<8x8xf32>
    %cst_34 = arith.constant 5.000000e-01 : f32
    %122 = vector.broadcast %cst_34 : f32 to vector<8x8xf32>
    %123 = arith.subf %116, %122 : vector<8x8xf32>
    %124 = arith.select %118, %121, %123 : vector<8x8xi1>, vector<8x8xf32>
    %125 = arith.addf %110, %124 : vector<8x8xf32>
    %cst_35 = arith.constant 0.166666672 : f32
    %126 = vector.broadcast %cst_35 : f32 to vector<8x8xf32>
    %127 = arith.mulf %125, %126 : vector<8x8xf32>
    %cst_36 = arith.constant 0xFF800000 : f32
    %128 = vector.broadcast %cst_36 : f32 to vector<8x8xf32>
    %129 = arith.select %11, %34, %128 : vector<8x8xi1>, vector<8x8xf32>
    %cst_37 = arith.constant dense<0xFF800000> : vector<8xf32>
    %130 = vector.multi_reduction <maximumf>, %129, %cst_37 [1] : vector<8x8xf32> to vector<8xf32>
    %131 = vector.shape_cast %130 : vector<8xf32> to vector<8x1xf32>
    %132 = vector.broadcast %131 : vector<8x1xf32> to vector<8x8xf32>
    %133 = arith.subf %34, %132 : vector<8x8xf32>
    %134 = math.exp %133 : vector<8x8xf32>
    %cst_38 = arith.constant 0.000000e+00 : f32
    %135 = vector.broadcast %cst_38 : f32 to vector<8x8xf32>
    %136 = arith.select %13, %134, %135 : vector<8x8xi1>, vector<8x8xf32>
    %cst_39 = arith.constant 0.000000e+00 : f32
    %137 = vector.broadcast %cst_39 : f32 to vector<8x8xf32>
    %138 = vector.shape_cast %127 : vector<8x8xf32> to vector<8x8x1xf32>
    %139 = vector.shape_cast %127 : vector<8x8xf32> to vector<8x1x8xf32>
    %140 = vector.broadcast %138 : vector<8x8x1xf32> to vector<8x8x8xf32>
    %141 = vector.broadcast %139 : vector<8x1x8xf32> to vector<8x8x8xf32>
    %142 = arith.cmpf ole, %140, %141 : vector<8x8x8xf32>
    %143 = vector.shape_cast %136 : vector<8x8xf32> to vector<8x1x8xf32>
    %cst_40 = arith.constant 0.000000e+00 : f32
    %144 = vector.shape_cast %143 : vector<8x1x8xf32> to vector<8x1x8xf32>
    %145 = vector.broadcast %144 : vector<8x1x8xf32> to vector<8x8x8xf32>
    %146 = vector.broadcast %cst_40 : f32 to vector<8x8x8xf32>
    %147 = arith.select %142, %145, %146 : vector<8x8x8xi1>, vector<8x8x8xf32>
    %cst_41 = arith.constant dense<0.000000e+00> : vector<8x8xf32>
    %148 = vector.multi_reduction <add>, %147, %cst_41 [2] : vector<8x8x8xf32> to vector<8x8xf32>
    %149 = arith.addf %137, %148 : vector<8x8xf32>
    %cst_42 = arith.constant 1.000000e-07 : f32
    %150 = vector.broadcast %cst_42 : f32 to vector<8x8xf32>
    %151 = arith.addf %149, %150 : vector<8x8xf32>
    %152 = math.log %151 : vector<8x8xf32>
    %153 = arith.subf %133, %152 : vector<8x8xf32>
    %cst_43 = arith.constant 0.000000e+00 : f32
    %154 = vector.broadcast %cst_43 : f32 to vector<8x8xf32>
    %155 = arith.select %16, %153, %154 : vector<8x8xi1>, vector<8x8xf32>
    %156 = vector.shape_cast %155 : vector<8x8xf32> to vector<1x8x8xf32>
    %cst_44 = arith.constant dense<0.000000e+00> : vector<1xf32>
    %157 = vector.multi_reduction <add>, %156, %cst_44 [1, 2] : vector<1x8x8xf32> to vector<1xf32>
    %158 = vector.shape_cast %157 : vector<1xf32> to vector<1x1x1xf32>
    %159 = vector.extract %158[0, 0, 0] : f32 from vector<1x1x1xf32>
    %cst_45 = arith.constant 0.000000e+00 : f32
    %160 = arith.addf %cst_45, %159 : f32
    %161 = vector.broadcast %160 : f32 to vector<1x8x128xf32>
    %c0_46 = arith.constant 0 : index
    %c0_47 = arith.constant 0 : index
    %c0_48 = arith.constant 0 : index
    %162 = vector.load %arg6[%c0_46, %c0_47, %c0_48] : memref<1x8x128xf32, #tpu.memory_space<vmem>>, vector<1x8x128xf32>
    tpu.vector_store %arg6[%c0_46, %c0_47, %c0_48], %161 {strides = array<i32>} : memref<1x8x128xf32, #tpu.memory_space<vmem>>, vector<1x8x128xf32>,
    return
  }
  func.func @transform_0(%arg0: i32) -> (i32, i32) {
    %c0_i32 = arith.constant 0 : i32
    %c0_i32_0 = arith.constant 0 : i32
    %c0_i32_1 = arith.constant 0 : i32
    return %c0_i32, %c0_i32_0 : i32, i32
  }
  func.func @transform_1(%arg0: i32) -> (i32, i32) {
    %c0_i32 = arith.constant 0 : i32
    %c0_i32_0 = arith.constant 0 : i32
    %c0_i32_1 = arith.constant 0 : i32
    return %c0_i32, %c0_i32_0 : i32, i32
  }
  func.func @transform_2(%arg0: i32) -> (i32, i32) {
    %c0_i32 = arith.constant 0 : i32
    %c0_i32_0 = arith.constant 0 : i32
    %c0_i32_1 = arith.constant 0 : i32
    return %c0_i32, %c0_i32_0 : i32, i32
  }
  func.func @transform_3(%arg0: i32) -> (i32, i32) {
    %c0_i32 = arith.constant 0 : i32
    %c0_i32_0 = arith.constant 0 : i32
    return %arg0, %c0_i32 : i32, i32
  }
  func.func @transform_4(%arg0: i32) -> (i32, i32) {
    %c0_i32 = arith.constant 0 : i32
    %c0_i32_0 = arith.constant 0 : i32
    return %arg0, %c0_i32 : i32, i32
  }
  func.func @transform_5(%arg0: i32) -> (i32, i32, i32) {
    %c0_i32 = arith.constant 0 : i32
    %c0_i32_0 = arith.constant 0 : i32
    %c0_i32_1 = arith.constant 0 : i32
    return %arg0, %c0_i32, %c0_i32_0 : i32, i32, i32
  }
}

</mosaic_0001>

<llo_original>
// kernel: tpu_custom_call.1
$region0: #{tpu_custom_call.1}
  #allocation0 [shape = 'u32[]', space=smem, size = 0x4, offset = 0x4, fixed_abs, tag = 'smem constant byte address 0x4 - core index']
  #allocation1 [shape = 'u32[144,128]{1,0:T(1,128)}', space=vmem, size = 0x12000, scoped, tag = 'internal scratch']
  %s0 = inlined_call_operand.vmem [shape: f32[1,8], index: 0, kind: input, shape index: {}]
  %s1 = inlined_call_operand.vmem [shape: f32[32,8], index: 1, kind: input, shape index: {}]
  %s2 = inlined_call_operand.vmem [shape: f32[6,8], index: 2, kind: input, shape index: {}]
  %s3 = inlined_call_operand.vmem [shape: f32[8,32], index: 3, kind: input, shape index: {}]
  %s4 = inlined_call_operand.vmem [shape: f32[8,6], index: 4, kind: input, shape index: {}]
  %s5 = inlined_call_operand.hbm [shape: f32[1,8,128], index: 5, kind: output, shape index: {}]
  %s6 = sld [smem:[#allocation0]]
  $region30: #{tpu_custom_call.1} parent=0
    _
  %s8 = ssub.s32 1, %s6
  %s9 = scalar_select 0, %s8, %s6
  $region1: #{tpu_custom_call.1} parent=0
    #allocation2 [shape = 'u8[4096]{0}', space=vmem, size = 0x1000, scoped, tag = 'output window, operand 0, single buffered']
    #allocation3 [shape = 's32[1]{0}', space=sflag, size = 0x4, scoped, tag = 'scoped memory for tpu_custom_call.1']
    %10 = vsyncpa [#allocation3], 0
    // Predicated region
    $region2: #{tpu_custom_call.1} parent=1 // pred_check
      _
    $region3: #{tpu_custom_call.1} parent=1 // pred_check_branch
      %12 = sbr.rel (0) target = $region5
    $region4: #{tpu_custom_call.1} parent=1 // pred_region
      _
    $region5: #{tpu_custom_call.1} parent=1 // pred_fallthru
      _
    // Predicated region
    $region6: #{tpu_custom_call.1} parent=1 // pred_check
      _
    $region7: #{tpu_custom_call.1} parent=1 // pred_check_branch
      %14 = sbr.rel (0) target = $region9
    $region8: #{tpu_custom_call.1} parent=1 // pred_region
      _
    $region9: #{tpu_custom_call.1} parent=1 // pred_fallthru
      _
    // Predicated region
    $region10: #{tpu_custom_call.1} parent=1 // pred_check
      _
    $region11: #{tpu_custom_call.1} parent=1 // pred_check_branch
      %16 = sbr.rel (0) target = $region13
    $region12: #{tpu_custom_call.1} parent=1 // pred_region
      _
    $region13: #{tpu_custom_call.1} parent=1 // pred_fallthru
      _
    // Predicated region
    $region14: #{tpu_custom_call.1} parent=1 // pred_check
      _
    $region15: #{tpu_custom_call.1} parent=1 // pred_check_branch
      %18 = sbr.rel (0) target = $region17
    $region16: #{tpu_custom_call.1} parent=1 // pred_region
      _
    $region17: #{tpu_custom_call.1} parent=1 // pred_fallthru
      _
    // Predicated region
    $region18: #{tpu_custom_call.1} parent=1 // pred_check
      _
    $region19: #{tpu_custom_call.1} parent=1 // pred_check_branch
      %20 = sbr.rel (0) target = $region21
    $region20: #{tpu_custom_call.1} parent=1 // pred_region
      _
    $region21: #{tpu_custom_call.1} parent=1 // pred_fallthru
      _
    %s21 = smul.u32 0, 8
    %v22 = vld [vmem:[%s3] sm:$0xff]
    %v23 = vld [vmem:[%s4] sm:$0xff]
    %v24 = vld [vmem:[%s1] sm:$0xff]
    %v25 = vld [vmem:[%s1 + $0x8] sm:$0xff]
    %v26 = vld [vmem:[%s1 + $0x10] sm:$0xff]
    %v27 = vld [vmem:[%s1 + $0x18] sm:$0xff]
    %v28 = vld [vmem:[%s2] sm:$0x3f]
    %v29 = vld [vmem:[%s0] sm:$0x1]
    %v30 = vlaneseq
    %v31 = vshrl.u32 %v30, 7
    %v32 = vstv %s21
    %v33 = vadd.s32 %v32, %v31
    %v34 = vlaneseq
    %v35 = vand.u32 %v34, 127
    %vm36 = vcmp.lt.s32.totalorder %v35, 8
    %vm37 = vcmp.ne.s32.totalorder %v33, %v35
    %vm38 = vmand %vm37, %vm36
    %vm39 = vcmp.lt.s32.totalorder %v33, 8
    %vm40 = vmand %vm38, %vm39
    %vm41 = vcmask 261120
    %v43 = vsel %vm41, %v22, 0
    %45 = vmatprep.subr.mxu0 0.0
    %v46 = vand.u32 %v24, 4294901760
    %47 = vmatpush1.msra.mxu0 %v46
    %48 = vmatprep.subr.mxu0 0.0
    %v49 = vand.u32 %v25, 4294901760
    %50 = vmatpush1.msra.mxu0 %v49
    %51 = vmatprep.subr.mxu0 0.0
    %v52 = vand.u32 %v26, 4294901760
    %53 = vmatpush1.msra.mxu0 %v52
    %54 = vmatprep.subr.mxu0 0.0
    %v55 = vand.u32 %v27, 4294901760
    %56 = vmatpush1.msra.mxu0 %v55
    %57 = vmatprep.subr.mxu0 0.0
    %58 = vmatpush1.msra.mxu0 0.0
    %59 = vmatprep.subr.mxu0 0.0
    %60 = vmatpush1.msra.mxu0 0.0
    %61 = vmatprep.subr.mxu0 0.0
    %62 = vmatpush1.msra.mxu0 0.0
    %63 = vmatprep.subr.mxu0 0.0
    %64 = vmatpush1.msra.mxu0 0.0
    %65 = vmatprep.subr.mxu0 0.0
    %66 = vmatpush1.msra.mxu0 0.0
    %67 = vmatprep.subr.mxu0 0.0
    %68 = vmatpush1.msra.mxu0 0.0
    %69 = vmatprep.subr.mxu0 0.0
    %70 = vmatpush1.msra.mxu0 0.0
    %71 = vmatprep.subr.mxu0 0.0
    %72 = vmatpush1.msra.mxu0 0.0
    %73 = vmatprep.subr.mxu0 0.0
    %74 = vmatpush1.msra.mxu0 0.0
    %75 = vmatprep.subr.mxu0 0.0
    %76 = vmatpush1.msra.mxu0 0.0
    %77 = vmatprep.subr.mxu0 0.0
    %78 = vmatpush1.msra.mxu0 0.0
    %79 = vmatprep.subr.mxu0 0.0
    %80 = vmatpush1.msra.mxu0 0.0
    %81 = vmatprep.subr.mxu0 0.0
    %82 = vmatpush1.msra.mxu0 0.0
    %83 = vmatprep.subr.mxu0 0.0
    %84 = vmatpush1.msra.mxu0 0.0
    %85 = vmatprep.subr.mxu0 0.0
    %86 = vmatpush1.msra.mxu0 0.0
    %87 = vmatprep.subr.mxu0 0.0
    %88 = vmatpush1.msra.mxu0 0.0
    %89 = vmatprep.subr.mxu0 0.0
    %90 = vmatpush1.msra.mxu0 0.0
    %91 = vmatprep.subr.mxu0 0.0
    %92 = vmatpush1.msra.mxu0 0.0
    %93 = vmatprep.subr.mxu0 0.0
    %94 = vmatpush1.msra.mxu0 0.0
    %95 = vmatprep.subr.mxu0 0.0
    %96 = vmatpush1.msra.mxu0 0.0
    %97 = vmatprep.subr.mxu0 0.0
    %98 = vmatpush1.msra.mxu0 0.0
    %99 = vmatprep.subr.mxu0 0.0
    %100 = vmatpush1.msra.mxu0 0.0
    %101 = vmatprep.subr.mxu0 0.0
    %102 = vmatpush1.msra.mxu0 0.0
    %103 = vmatprep.subr.mxu0 0.0
    %104 = vmatpush1.msra.mxu0 0.0
    %105 = vmatprep.subr.mxu0 0.0
    %106 = vmatpush1.msra.mxu0 0.0
    %107 = vmatprep.subr.mxu0 0.0
    %108 = vmatpush1.msra.mxu0 0.0
    %109 = vmatprep.subr.mxu0 0.0
    %110 = vmatpush1.msra.mxu0 0.0
    %111 = vmatprep.subr.mxu0 0.0
    %112 = vmatpush1.msra.mxu0 0.0
    %113 = vmatprep.mubr.f32.mxu0 0.0
    %v114 = vand.u32 %v43, 4294901760
    %v115 = vsub.f32 %v43, %v114
    %v116 = vand.u32 %v115, 4294901760
    %v117 = vsub.f32 %v115, %v116
    %v118 = vand.u32 %v117, 4294901760
    %119 = vmatmul.mubr.f32.gmra.mrb[0].mxu0 %v118
    %v120 = vpop.f32.mrb[0].mxu0
    %v121 = vadd.f32 0.0, %v120
    %v122 = vpop.f32.mrb[0].mxu0
    %123 = vdwg.mxu0
    %124 = vmatprep.subr.mxu0 0.0
    %v125 = vand.u32 %v24, 4294901760
    %v126 = vsub.f32 %v24, %v125
    %v127 = vand.u32 %v126, 4294901760
    %v128 = vsub.f32 %v126, %v127
    %v129 = vand.u32 %v128, 4294901760
    %130 = vmatpush1.msra.mxu0 %v129
    %131 = vmatprep.subr.mxu0 0.0
    %v132 = vand.u32 %v25, 4294901760
    %v133 = vsub.f32 %v25, %v132
    %v134 = vand.u32 %v133, 4294901760
    %v135 = vsub.f32 %v133, %v134
    %v136 = vand.u32 %v135, 4294901760
    %137 = vmatpush1.msra.mxu0 %v136
    %138 = vmatprep.subr.mxu0 0.0
    %v139 = vand.u32 %v26, 4294901760
    %v140 = vsub.f32 %v26, %v139
    %v141 = vand.u32 %v140, 4294901760
    %v142 = vsub.f32 %v140, %v141
    %v143 = vand.u32 %v142, 4294901760
    %144 = vmatpush1.msra.mxu0 %v143
    %145 = vmatprep.subr.mxu0 0.0
    %v146 = vand.u32 %v27, 4294901760
    %v147 = vsub.f32 %v27, %v146
    %v148 = vand.u32 %v147, 4294901760
    %v149 = vsub.f32 %v147, %v148
    %v150 = vand.u32 %v149, 4294901760
    %151 = vmatpush1.msra.mxu0 %v150
    %152 = vmatprep.subr.mxu0 0.0
    %153 = vmatpush1.msra.mxu0 0.0
    %154 = vmatprep.subr.mxu0 0.0
    %155 = vmatpush1.msra.mxu0 0.0
    %156 = vmatprep.subr.mxu0 0.0
    %157 = vmatpush1.msra.mxu0 0.0
    %158 = vmatprep.subr.mxu0 0.0
    %159 = vmatpush1.msra.mxu0 0.0
    %160 = vmatprep.subr.mxu0 0.0
    %161 = vmatpush1.msra.mxu0 0.0
    %162 = vmatprep.subr.mxu0 0.0
    %163 = vmatpush1.msra.mxu0 0.0
    %164 = vmatprep.subr.mxu0 0.0
    %165 = vmatpush1.msra.mxu0 0.0
    %166 = vmatprep.subr.mxu0 0.0
    %167 = vmatpush1.msra.mxu0 0.0
    %168 = vmatprep.subr.mxu0 0.0
    %169 = vmatpush1.msra.mxu0 0.0
    %170 = vmatprep.subr.mxu0 0.0
    %171 = vmatpush1.msra.mxu0 0.0
    %172 = vmatprep.subr.mxu0 0.0
    %173 = vmatpush1.msra.mxu0 0.0
    %174 = vmatprep.subr.mxu0 0.0
    %175 = vmatpush1.msra.mxu0 0.0
    %176 = vmatprep.subr.mxu0 0.0
    %177 = vmatpush1.msra.mxu0 0.0
    %178 = vmatprep.subr.mxu0 0.0
    %179 = vmatpush1.msra.mxu0 0.0
    %180 = vmatprep.subr.mxu0 0.0
    %181 = vmatpush1.msra.mxu0 0.0
    %182 = vmatprep.subr.mxu0 0.0
    %183 = vmatpush1.msra.mxu0 0.0
    %184 = vmatprep.subr.mxu0 0.0
    %185 = vmatpush1.msra.mxu0 0.0
    %186 = vmatprep.subr.mxu0 0.0
    %187 = vmatpush1.msra.mxu0 0.0
    %188 = vmatprep.subr.mxu0 0.0
    %189 = vmatpush1.msra.mxu0 0.0
    %190 = vmatprep.subr.mxu0 0.0
    %191 = vmatpush1.msra.mxu0 0.0
    %192 = vmatprep.subr.mxu0 0.0
    %193 = vmatpush1.msra.mxu0 0.0
    %194 = vmatprep.subr.mxu0 0.0
    %195 = vmatpush1.msra.mxu0 0.0
    %196 = vmatprep.subr.mxu0 0.0
    %197 = vmatpush1.msra.mxu0 0.0
    %198 = vmatprep.subr.mxu0 0.0
    %199 = vmatpush1.msra.mxu0 0.0
    %200 = vmatprep.subr.mxu0 0.0
    %201 = vmatpush1.msra.mxu0 0.0
    %202 = vmatprep.subr.mxu0 0.0
    %203 = vmatpush1.msra.mxu0 0.0
    %204 = vmatprep.subr.mxu0 0.0
    %205 = vmatpush1.msra.mxu0 0.0
    %206 = vmatprep.subr.mxu0 0.0
    %207 = vmatpush1.msra.mxu0 0.0
    %208 = vmatprep.mubr.f32.mxu0 0.0
    %v209 = vand.u32 %v43, 4294901760
    %210 = vmatmul.mubr.f32.gmra.mrb[0].mxu0 %v209
    %v211 = vpop.f32.mrb[0].mxu0
    %v212 = vadd.f32 %v121, %v211
    %v213 = vpop.f32.mrb[0].mxu0
    %214 = vdwg.mxu0
    %215 = vmatprep.subr.mxu0 0.0
    %v216 = vand.u32 %v24, 4294901760
    %v217 = vsub.f32 %v24, %v216
    %218 = vmatpush1.msra.mxu0 %v217
    %219 = vmatprep.subr.mxu0 0.0
    %v220 = vand.u32 %v25, 4294901760
    %v221 = vsub.f32 %v25, %v220
    %222 = vmatpush1.msra.mxu0 %v221
    %223 = vmatprep.subr.mxu0 0.0
    %v224 = vand.u32 %v26, 4294901760
    %v225 = vsub.f32 %v26, %v224
    %226 = vmatpush1.msra.mxu0 %v225
    %227 = vmatprep.subr.mxu0 0.0
    %v228 = vand.u32 %v27, 4294901760
    %v229 = vsub.f32 %v27, %v228
    %230 = vmatpush1.msra.mxu0 %v229
    %231 = vmatprep.subr.mxu0 0.0
    %232 = vmatpush1.msra.mxu0 0.0
    %233 = vmatprep.subr.mxu0 0.0
    %234 = vmatpush1.msra.mxu0 0.0
    %235 = vmatprep.subr.mxu0 0.0
    %236 = vmatpush1.msra.mxu0 0.0
    %237 = vmatprep.subr.mxu0 0.0
    %238 = vmatpush1.msra.mxu0 0.0
    %239 = vmatprep.subr.mxu0 0.0
    %240 = vmatpush1.msra.mxu0 0.0
    %241 = vmatprep.subr.mxu0 0.0
    %242 = vmatpush1.msra.mxu0 0.0
    %243 = vmatprep.subr.mxu0 0.0
    %244 = vmatpush1.msra.mxu0 0.0
    %245 = vmatprep.subr.mxu0 0.0
    %246 = vmatpush1.msra.mxu0 0.0
    %247 = vmatprep.subr.mxu0 0.0
    %248 = vmatpush1.msra.mxu0 0.0
    %249 = vmatprep.subr.mxu0 0.0
    %250 = vmatpush1.msra.mxu0 0.0
    %251 = vmatprep.subr.mxu0 0.0
    %252 = vmatpush1.msra.mxu0 0.0
    %253 = vmatprep.subr.mxu0 0.0
    %254 = vmatpush1.msra.mxu0 0.0
    %255 = vmatprep.subr.mxu0 0.0
    %256 = vmatpush1.msra.mxu0 0.0
    %257 = vmatprep.subr.mxu0 0.0
    %258 = vmatpush1.msra.mxu0 0.0
    %259 = vmatprep.subr.mxu0 0.0
    %260 = vmatpush1.msra.mxu0 0.0
    %261 = vmatprep.subr.mxu0 0.0
    %262 = vmatpush1.msra.mxu0 0.0
    %263 = vmatprep.subr.mxu0 0.0
    %264 = vmatpush1.msra.mxu0 0.0
    %265 = vmatprep.subr.mxu0 0.0
    %266 = vmatpush1.msra.mxu0 0.0
    %267 = vmatprep.subr.mxu0 0.0
    %268 = vmatpush1.msra.mxu0 0.0
    %269 = vmatprep.subr.mxu0 0.0
    %270 = vmatpush1.msra.mxu0 0.0
    %271 = vmatprep.subr.mxu0 0.0
    %272 = vmatpush1.msra.mxu0 0.0
    %273 = vmatprep.subr.mxu0 0.0
    %274 = vmatpush1.msra.mxu0 0.0
    %275 = vmatprep.subr.mxu0 0.0
    %276 = vmatpush1.msra.mxu0 0.0
    %277 = vmatprep.subr.mxu0 0.0
    %278 = vmatpush1.msra.mxu0 0.0
    %279 = vmatprep.subr.mxu0 0.0
    %280 = vmatpush1.msra.mxu0 0.0
    %281 = vmatprep.subr.mxu0 0.0
    %282 = vmatpush1.msra.mxu0 0.0
    %283 = vmatprep.subr.mxu0 0.0
    %284 = vmatpush1.msra.mxu0 0.0
    %285 = vmatprep.subr.mxu0 0.0
    %286 = vmatpush1.msra.mxu0 0.0
    %287 = vmatprep.mubr.f32.mxu0 0.0
    %v288 = vand.u32 %v43, 4294901760
    %v289 = vsub.f32 %v43, %v288
    %290 = vmatmul.mubr.f32.gmra.mrb[0].mxu0 %v289
    %v291 = vpop.f32.mrb[0].mxu0
    %v292 = vadd.f32 %v212, %v291
    %v293 = vpop.f32.mrb[0].mxu0
    %294 = vdwg.mxu0
    %295 = vmatprep.subr.mxu0 0.0
    %v296 = vand.u32 %v24, 4294901760
    %297 = vmatpush1.msra.mxu0 %v296
    %298 = vmatprep.subr.mxu0 0.0
    %v299 = vand.u32 %v25, 4294901760
    %300 = vmatpush1.msra.mxu0 %v299
    %301 = vmatprep.subr.mxu0 0.0
    %v302 = vand.u32 %v26, 4294901760
    %303 = vmatpush1.msra.mxu0 %v302
    %304 = vmatprep.subr.mxu0 0.0
    %v305 = vand.u32 %v27, 4294901760
    %306 = vmatpush1.msra.mxu0 %v305
    %307 = vmatprep.subr.mxu0 0.0
    %308 = vmatpush1.msra.mxu0 0.0
    %309 = vmatprep.subr.mxu0 0.0
    %310 = vmatpush1.msra.mxu0 0.0
    %311 = vmatprep.subr.mxu0 0.0
    %312 = vmatpush1.msra.mxu0 0.0
    %313 = vmatprep.subr.mxu0 0.0
    %314 = vmatpush1.msra.mxu0 0.0
    %315 = vmatprep.subr.mxu0 0.0
    %316 = vmatpush1.msra.mxu0 0.0
    %317 = vmatprep.subr.mxu0 0.0
    %318 = vmatpush1.msra.mxu0 0.0
    %319 = vmatprep.subr.mxu0 0.0
    %320 = vmatpush1.msra.mxu0 0.0
    %321 = vmatprep.subr.mxu0 0.0
    %322 = vmatpush1.msra.mxu0 0.0
    %323 = vmatprep.subr.mxu0 0.0
    %324 = vmatpush1.msra.mxu0 0.0
    %325 = vmatprep.subr.mxu0 0.0
    %326 = vmatpush1.msra.mxu0 0.0
    %327 = vmatprep.subr.mxu0 0.0
    %328 = vmatpush1.msra.mxu0 0.0
    %329 = vmatprep.subr.mxu0 0.0
    %330 = vmatpush1.msra.mxu0 0.0
    %331 = vmatprep.subr.mxu0 0.0
    %332 = vmatpush1.msra.mxu0 0.0
    %333 = vmatprep.subr.mxu0 0.0
    %334 = vmatpush1.msra.mxu0 0.0
    %335 = vmatprep.subr.mxu0 0.0
    %336 = vmatpush1.msra.mxu0 0.0
    %337 = vmatprep.subr.mxu0 0.0
    %338 = vmatpush1.msra.mxu0 0.0
    %339 = vmatprep.subr.mxu0 0.0
    %340 = vmatpush1.msra.mxu0 0.0
    %341 = vmatprep.subr.mxu0 0.0
    %342 = vmatpush1.msra.mxu0 0.0
    %343 = vmatprep.subr.mxu0 0.0
    %344 = vmatpush1.msra.mxu0 0.0
    %345 = vmatprep.subr.mxu0 0.0
    %346 = vmatpush1.msra.mxu0 0.0
    %347 = vmatprep.subr.mxu0 0.0
    %348 = vmatpush1.msra.mxu0 0.0
    %349 = vmatprep.subr.mxu0 0.0
    %350 = vmatpush1.msra.mxu0 0.0
    %351 = vmatprep.subr.mxu0 0.0
    %352 = vmatpush1.msra.mxu0 0.0
    %353 = vmatprep.subr.mxu0 0.0
    %354 = vmatpush1.msra.mxu0 0.0
    %355 = vmatprep.subr.mxu0 0.0
    %356 = vmatpush1.msra.mxu0 0.0
    %357 = vmatprep.subr.mxu0 0.0
    %358 = vmatpush1.msra.mxu0 0.0
    %359 = vmatprep.subr.mxu0 0.0
    %360 = vmatpush1.msra.mxu0 0.0
    %361 = vmatprep.subr.mxu0 0.0
    %362 = vmatpush1.msra.mxu0 0.0
    %363 = vmatprep.mubr.f32.mxu0 0.0
    %v364 = vand.u32 %v43, 4294901760
    %v365 = vsub.f32 %v43, %v364
    %v366 = vand.u32 %v365, 4294901760
    %367 = vmatmul.mubr.f32.gmra.mrb[0].mxu0 %v366
    %v368 = vpop.f32.mrb[0].mxu0
    %v369 = vadd.f32 %v292, %v368
    %v370 = vpop.f32.mrb[0].mxu0
    %371 = vdwg.mxu0
    %372 = vmatprep.subr.mxu0 0.0
    %v373 = vand.u32 %v24, 4294901760
    %v374 = vsub.f32 %v24, %v373
    %v375 = vand.u32 %v374, 4294901760
    %376 = vmatpush1.msra.mxu0 %v375
    %377 = vmatprep.subr.mxu0 0.0
    %v378 = vand.u32 %v25, 4294901760
    %v379 = vsub.f32 %v25, %v378
    %v380 = vand.u32 %v379, 4294901760
    %381 = vmatpush1.msra.mxu0 %v380
    %382 = vmatprep.subr.mxu0 0.0
    %v383 = vand.u32 %v26, 4294901760
    %v384 = vsub.f32 %v26, %v383
    %v385 = vand.u32 %v384, 4294901760
    %386 = vmatpush1.msra.mxu0 %v385
    %387 = vmatprep.subr.mxu0 0.0
    %v388 = vand.u32 %v27, 4294901760
    %v389 = vsub.f32 %v27, %v388
    %v390 = vand.u32 %v389, 4294901760
    %391 = vmatpush1.msra.mxu0 %v390
    %392 = vmatprep.subr.mxu0 0.0
    %393 = vmatpush1.msra.mxu0 0.0
    %394 = vmatprep.subr.mxu0 0.0
    %395 = vmatpush1.msra.mxu0 0.0
    %396 = vmatprep.subr.mxu0 0.0
    %397 = vmatpush1.msra.mxu0 0.0
    %398 = vmatprep.subr.mxu0 0.0
    %399 = vmatpush1.msra.mxu0 0.0
    %400 = vmatprep.subr.mxu0 0.0
    %401 = vmatpush1.msra.mxu0 0.0
    %402 = vmatprep.subr.mxu0 0.0
    %403 = vmatpush1.msra.mxu0 0.0
    %404 = vmatprep.subr.mxu0 0.0
    %405 = vmatpush1.msra.mxu0 0.0
    %406 = vmatprep.subr.mxu0 0.0
    %407 = vmatpush1.msra.mxu0 0.0
    %408 = vmatprep.subr.mxu0 0.0
    %409 = vmatpush1.msra.mxu0 0.0
    %410 = vmatprep.subr.mxu0 0.0
    %411 = vmatpush1.msra.mxu0 0.0
    %412 = vmatprep.subr.mxu0 0.0
    %413 = vmatpush1.msra.mxu0 0.0
    %414 = vmatprep.subr.mxu0 0.0
    %415 = vmatpush1.msra.mxu0 0.0
    %416 = vmatprep.subr.mxu0 0.0
    %417 = vmatpush1.msra.mxu0 0.0
    %418 = vmatprep.subr.mxu0 0.0
    %419 = vmatpush1.msra.mxu0 0.0
    %420 = vmatprep.subr.mxu0 0.0
    %421 = vmatpush1.msra.mxu0 0.0
    %422 = vmatprep.subr.mxu0 0.0
    %423 = vmatpush1.msra.mxu0 0.0
    %424 = vmatprep.subr.mxu0 0.0
    %425 = vmatpush1.msra.mxu0 0.0
    %426 = vmatprep.subr.mxu0 0.0
    %427 = vmatpush1.msra.mxu0 0.0
    %428 = vmatprep.subr.mxu0 0.0
    %429 = vmatpush1.msra.mxu0 0.0
    %430 = vmatprep.subr.mxu0 0.0
    %431 = vmatpush1.msra.mxu0 0.0
    %432 = vmatprep.subr.mxu0 0.0
    %433 = vmatpush1.msra.mxu0 0.0
    %434 = vmatprep.subr.mxu0 0.0
    %435 = vmatpush1.msra.mxu0 0.0
    %436 = vmatprep.subr.mxu0 0.0
    %437 = vmatpush1.msra.mxu0 0.0
    %438 = vmatprep.subr.mxu0 0.0
    %439 = vmatpush1.msra.mxu0 0.0
    %440 = vmatprep.subr.mxu0 0.0
    %441 = vmatpush1.msra.mxu0 0.0
    %442 = vmatprep.subr.mxu0 0.0
    %443 = vmatpush1.msra.mxu0 0.0
    %444 = vmatprep.subr.mxu0 0.0
    %445 = vmatpush1.msra.mxu0 0.0
    %446 = vmatprep.subr.mxu0 0.0
    %447 = vmatpush1.msra.mxu0 0.0
    %448 = vmatprep.mubr.f32.mxu0 0.0
    %v449 = vand.u32 %v43, 4294901760
    %450 = vmatmul.mubr.f32.gmra.mrb[0].mxu0 %v449
    %v451 = vpop.f32.mrb[0].mxu0
    %v452 = vadd.f32 %v369, %v451
    %v453 = vpop.f32.mrb[0].mxu0
    %454 = vdwg.mxu0
    %455 = vmatprep.subr.mxu0 0.0
    %v456 = vand.u32 %v24, 4294901760
    %457 = vmatpush1.msra.mxu0 %v456
    %458 = vmatprep.subr.mxu0 0.0
    %v459 = vand.u32 %v25, 4294901760
    %460 = vmatpush1.msra.mxu0 %v459
    %461 = vmatprep.subr.mxu0 0.0
    %v462 = vand.u32 %v26, 4294901760
    %463 = vmatpush1.msra.mxu0 %v462
    %464 = vmatprep.subr.mxu0 0.0
    %v465 = vand.u32 %v27, 4294901760
    %466 = vmatpush1.msra.mxu0 %v465
    %467 = vmatprep.subr.mxu0 0.0
    %468 = vmatpush1.msra.mxu0 0.0
    %469 = vmatprep.subr.mxu0 0.0
    %470 = vmatpush1.msra.mxu0 0.0
    %471 = vmatprep.subr.mxu0 0.0
    %472 = vmatpush1.msra.mxu0 0.0
    %473 = vmatprep.subr.mxu0 0.0
    %474 = vmatpush1.msra.mxu0 0.0
    %475 = vmatprep.subr.mxu0 0.0
    %476 = vmatpush1.msra.mxu0 0.0
    %477 = vmatprep.subr.mxu0 0.0
    %478 = vmatpush1.msra.mxu0 0.0
    %479 = vmatprep.subr.mxu0 0.0
    %480 = vmatpush1.msra.mxu0 0.0
    %481 = vmatprep.subr.mxu0 0.0
    %482 = vmatpush1.msra.mxu0 0.0
    %483 = vmatprep.subr.mxu0 0.0
    %484 = vmatpush1.msra.mxu0 0.0
    %485 = vmatprep.subr.mxu0 0.0
    %486 = vmatpush1.msra.mxu0 0.0
    %487 = vmatprep.subr.mxu0 0.0
    %488 = vmatpush1.msra.mxu0 0.0
    %489 = vmatprep.subr.mxu0 0.0
    %490 = vmatpush1.msra.mxu0 0.0
    %491 = vmatprep.subr.mxu0 0.0
    %492 = vmatpush1.msra.mxu0 0.0
    %493 = vmatprep.subr.mxu0 0.0
    %494 = vmatpush1.msra.mxu0 0.0
    %495 = vmatprep.subr.mxu0 0.0
    %496 = vmatpush1.msra.mxu0 0.0
    %497 = vmatprep.subr.mxu0 0.0
    %498 = vmatpush1.msra.mxu0 0.0
    %499 = vmatprep.subr.mxu0 0.0
    %500 = vmatpush1.msra.mxu0 0.0
    %501 = vmatprep.subr.mxu0 0.0
    %502 = vmatpush1.msra.mxu0 0.0
    %503 = vmatprep.subr.mxu0 0.0
    %504 = vmatpush1.msra.mxu0 0.0
    %505 = vmatprep.subr.mxu0 0.0
    %506 = vmatpush1.msra.mxu0 0.0
    %507 = vmatprep.subr.mxu0 0.0
    %508 = vmatpush1.msra.mxu0 0.0
    %509 = vmatprep.subr.mxu0 0.0
    %510 = vmatpush1.msra.mxu0 0.0
    %511 = vmatprep.subr.mxu0 0.0
    %512 = vmatpush1.msra.mxu0 0.0
    %513 = vmatprep.subr.mxu0 0.0
    %514 = vmatpush1.msra.mxu0 0.0
    %515 = vmatprep.subr.mxu0 0.0
    %516 = vmatpush1.msra.mxu0 0.0
    %517 = vmatprep.subr.mxu0 0.0
    %518 = vmatpush1.msra.mxu0 0.0
    %519 = vmatprep.subr.mxu0 0.0
    %520 = vmatpush1.msra.mxu0 0.0
    %521 = vmatprep.subr.mxu0 0.0
    %522 = vmatpush1.msra.mxu0 0.0
    %523 = vmatprep.mubr.f32.mxu0 0.0
    %v524 = vand.u32 %v43, 4294901760
    %525 = vmatmul.mubr.f32.gmra.mrb[0].mxu0 %v524
    %v526 = vpop.f32.mrb[0].mxu0
    %v527 = vadd.f32 %v452, %v526
    %v528 = vpop.f32.mrb[0].mxu0
    %529 = vdwg.mxu0
    %v530 = vmul.f32 %v22, %v22
    %v531 = vsel %vm41, %v530, 0.0
    %532 = vadd.xlane.f32.xlu0 %v531
    %v533 = vpop.xlane.xlu0 %532
    %v535 = vlaneseq
    %v536 = vshrl.u32 %v535, 7
    %v537 = vsub.s32 0, %v536
    %v538 = vrot.slane %v29, %v537
    %v540 = vadd.f32 %v533, %v538
    %v541 = vmul.f32 %v527, 2.0
    %v542 = vsub.f32 %v540, %v541
    %vm543 = vcmp.eq.s32.totalorder %v33, %v35
    %v544 = vmax.f32 %v542, 0.0
    %v545 = vsel %vm543, 0.0, %v544
    %v546 = vrsqrt.pop %v545
    %v547 = vmul.f32 %v545, %v546
    %vm548 = vcmp.eq.f32.partialorder %v545, inf
    %v549 = vsel %vm548, %v545, %v547
    %vm550 = vcmp.eq.f32.partialorder %v545, 0.0
    %v551 = vand.u32 %v545, 2147483648
    %v552 = vsel %vm550, %v551, %v549
    %v553 = vmul.f32 %v552, -0.5
    %555 = vset.pattern.permute.xlu0 0
    %556 = vperm.xlu0 %555, %v23
    %v557 = vpop.permute.xlu0 %556
    %v559 = vlaneseq
    %v560 = vshrl.u32 %v559, 7
    %v561 = vsub.s32 0, %v560
    %v562 = vrot.slane %v28, %v561
    %v563 = vsub.f32 %v557, %v562
    %v564 = vand.u32 2147483647, %v563
    %vm565 = vcmp.lt.f32.partialorder %v564, 1.0
    %v566 = vmul.f32 %v563, %v563
    %v567 = vmul.f32 %v566, 0.5
    %v568 = vsub.f32 %v564, 0.5
    %v569 = vsel %vm565, %v567, %v568
    %v570 = vadd.f32 %v569, 0.0
    %571 = vset.pattern.permute.xlu0 1
    %572 = vperm.xlu0 %571, %v23
    %v573 = vpop.permute.xlu0 %572
    %v575 = vlaneseq
    %v576 = vshrl.u32 %v575, 7
    %v577 = vsub.s32 1, %v576
    %v578 = vrot.slane %v28, %v577
    %v579 = vsub.f32 %v573, %v578
    %v580 = vand.u32 2147483647, %v579
    %vm581 = vcmp.lt.f32.partialorder %v580, 1.0
    %v582 = vmul.f32 %v579, %v579
    %v583 = vmul.f32 %v582, 0.5
    %v584 = vsub.f32 %v580, 0.5
    %v585 = vsel %vm581, %v583, %v584
    %v586 = vadd.f32 %v570, %v585
    %587 = vset.pattern.permute.xlu0 2
    %588 = vperm.xlu0 %587, %v23
    %v589 = vpop.permute.xlu0 %588
    %v591 = vlaneseq
    %v592 = vshrl.u32 %v591, 7
    %v593 = vsub.s32 2, %v592
    %v594 = vrot.slane %v28, %v593
    %v595 = vsub.f32 %v589, %v594
    %v596 = vand.u32 2147483647, %v595
    %vm597 = vcmp.lt.f32.partialorder %v596, 1.0
    %v598 = vmul.f32 %v595, %v595
    %v599 = vmul.f32 %v598, 0.5
    %v600 = vsub.f32 %v596, 0.5
    %v601 = vsel %vm597, %v599, %v600
    %v602 = vadd.f32 %v586, %v601
    %603 = vset.pattern.permute.xlu0 3
    %604 = vperm.xlu0 %603, %v23
    %v605 = vpop.permute.xlu0 %604
    %v607 = vlaneseq
    %v608 = vshrl.u32 %v607, 7
    %v609 = vsub.s32 3, %v608
    %v610 = vrot.slane %v28, %v609
    %v611 = vsub.f32 %v605, %v610
    %v612 = vand.u32 2147483647, %v611
    %vm613 = vcmp.lt.f32.partialorder %v612, 1.0
    %v614 = vmul.f32 %v611, %v611
    %v615 = vmul.f32 %v614, 0.5
    %v616 = vsub.f32 %v612, 0.5
    %v617 = vsel %vm613, %v615, %v616
    %v618 = vadd.f32 %v602, %v617
    %619 = vset.pattern.permute.xlu0 4
    %620 = vperm.xlu0 %619, %v23
    %v621 = vpop.permute.xlu0 %620
    %v623 = vlaneseq
    %v624 = vshrl.u32 %v623, 7
    %v625 = vsub.s32 4, %v624
    %v626 = vrot.slane %v28, %v625
    %v627 = vsub.f32 %v621, %v626
    %v628 = vand.u32 2147483647, %v627
    %vm629 = vcmp.lt.f32.partialorder %v628, 1.0
    %v630 = vmul.f32 %v627, %v627
    %v631 = vmul.f32 %v630, 0.5
    %v632 = vsub.f32 %v628, 0.5
    %v633 = vsel %vm629, %v631, %v632
    %v634 = vadd.f32 %v618, %v633
    %635 = vset.pattern.permute.xlu0 5
    %636 = vperm.xlu0 %635, %v23
    %v637 = vpop.permute.xlu0 %636
    %v639 = vlaneseq
    %v640 = vshrl.u32 %v639, 7
    %v641 = vsub.s32 5, %v640
    %v642 = vrot.slane %v28, %v641
    %v643 = vsub.f32 %v637, %v642
    %v644 = vand.u32 2147483647, %v643
    %vm645 = vcmp.lt.f32.partialorder %v644, 1.0
    %v646 = vmul.f32 %v643, %v643
    %v647 = vmul.f32 %v646, 0.5
    %v648 = vsub.f32 %v644, 0.5
    %v649 = vsel %vm645, %v647, %v648
    %v650 = vadd.f32 %v634, %v649
    %v651 = vmul.f32 %v650, 0.16666667
    %v652 = vsel %vm36, %v553, -inf
    %vm653 = vcmask 64512
    %v654 = vsel %vm653, %v652, -inf
    %655 = vmax.xlane.f32.xlu0 %v654
    %v656 = vpop.xlane.xlu0 %655
    %v657 = vsub.f32 %v553, %v656
    %v658 = vmul.f32 %v657, 1.442695
    %v659 = vpow.pop %v658
    %v660 = vsel %vm38, %v659, 0.0
    %v661 = vlaneseq
    %v662 = vshrl.u32 %v661, 7
    %v663 = vsub.s32 0, %v662
    %v664 = vrot.slane %v651, %v663
    %666 = vbcast.lane.b32.xlu0 %v664, 256
    %v667 = vpop.permute.xlu0 %666
    %v668 = vlaneseq
    %v669 = vshrl.u32 %v668, 7
    %v670 = vsub.s32 1, %v669
    %v671 = vrot.slane %v651, %v670
    %673 = vbcast.lane.b32.xlu0 %v671, 256
    %v674 = vpop.permute.xlu0 %673
    %v675 = vlaneseq
    %v676 = vshrl.u32 %v675, 7
    %v677 = vsub.s32 2, %v676
    %v678 = vrot.slane %v651, %v677
    %680 = vbcast.lane.b32.xlu0 %v678, 256
    %v681 = vpop.permute.xlu0 %680
    %v682 = vlaneseq
    %v683 = vshrl.u32 %v682, 7
    %v684 = vsub.s32 3, %v683
    %v685 = vrot.slane %v651, %v684
    %687 = vbcast.lane.b32.xlu0 %v685, 256
    %v688 = vpop.permute.xlu0 %687
    %v689 = vlaneseq
    %v690 = vshrl.u32 %v689, 7
    %v691 = vsub.s32 4, %v690
    %v692 = vrot.slane %v651, %v691
    %694 = vbcast.lane.b32.xlu0 %v692, 256
    %v695 = vpop.permute.xlu0 %694
    %v696 = vlaneseq
    %v697 = vshrl.u32 %v696, 7
    %v698 = vsub.s32 5, %v697
    %v699 = vrot.slane %v651, %v698
    %701 = vbcast.lane.b32.xlu0 %v699, 256
    %v702 = vpop.permute.xlu0 %701
    %v703 = vlaneseq
    %v704 = vshrl.u32 %v703, 7
    %v705 = vsub.s32 6, %v704
    %v706 = vrot.slane %v651, %v705
    %708 = vbcast.lane.b32.xlu0 %v706, 256
    %v709 = vpop.permute.xlu0 %708
    %v710 = vlaneseq
    %v711 = vshrl.u32 %v710, 7
    %v712 = vsub.s32 7, %v711
    %v713 = vrot.slane %v651, %v712
    %715 = vbcast.lane.b32.xlu0 %v713, 256
    %v716 = vpop.permute.xlu0 %715
    %v718 = vcombine.high %v651, %v651
    %v720 = vunpack.c.l.s4 1966171168
    %v721 = vunpack.c.0.s8 %v720
    %v722 = vlaneseq
    %v723 = vshrl.u32 %v722, 7
    %v724 = vsub.s32 %v721, %v723
    %v725 = vrot.slane %v651, %v724
    %v727 = vunpack.c.l.s4 1966171168
    %v728 = vunpack.c.0.s8 %v727
    %v729 = vlaneseq
    %v730 = vshrl.u32 %v729, 7
    %v731 = vsub.s32 %v728, %v730
    %v732 = vrot.slane %v718, %v731
    %v733 = vcombine.high %v725, %v725
    %v734 = vcombine.high %v732, %v732
    %v736 = vunpack.c.l.s4 1966171168
    %v737 = vunpack.c.0.s8 %v736
    %v738 = vlaneseq
    %v739 = vshrl.u32 %v738, 7
    %v740 = vsub.s32 %v737, %v739
    %v741 = vrot.slane %v725, %v740
    %v743 = vunpack.c.l.s4 1966171168
    %v744 = vunpack.c.0.s8 %v743
    %v745 = vlaneseq
    %v746 = vshrl.u32 %v745, 7
    %v747 = vsub.s32 %v744, %v746
    %v748 = vrot.slane %v732, %v747
    %v750 = vunpack.c.l.s4 1966171168
    %v751 = vunpack.c.0.s8 %v750
    %v752 = vlaneseq
    %v753 = vshrl.u32 %v752, 7
    %v754 = vsub.s32 %v751, %v753
    %v755 = vrot.slane %v733, %v754
    %v757 = vunpack.c.l.s4 1966171168
    %v758 = vunpack.c.0.s8 %v757
    %v759 = vlaneseq
    %v760 = vshrl.u32 %v759, 7
    %v761 = vsub.s32 %v758, %v760
    %v762 = vrot.slane %v734, %v761
    %v763 = vcombine.high %v741, %v741
    %v764 = vcombine.high %v748, %v748
    %v765 = vcombine.high %v755, %v755
    %v766 = vcombine.high %v762, %v762
    %v767 = vlaneseq
    %v768 = vshrl.u32 %v767, 7
    %v769 = vsub.s32 0, %v768
    %v770 = vrot.slane %v741, %v769
    %v771 = vlaneseq
    %v772 = vshrl.u32 %v771, 7
    %v773 = vsub.s32 0, %v772
    %v774 = vrot.slane %v755, %v773
    %v775 = vlaneseq
    %v776 = vshrl.u32 %v775, 7
    %v777 = vsub.s32 0, %v776
    %v778 = vrot.slane %v763, %v777
    %v779 = vlaneseq
    %v780 = vshrl.u32 %v779, 7
    %v781 = vsub.s32 0, %v780
    %v782 = vrot.slane %v765, %v781
    %v783 = vlaneseq
    %v784 = vshrl.u32 %v783, 7
    %v785 = vsub.s32 0, %v784
    %v786 = vrot.slane %v748, %v785
    %v787 = vlaneseq
    %v788 = vshrl.u32 %v787, 7
    %v789 = vsub.s32 0, %v788
    %v790 = vrot.slane %v762, %v789
    %v791 = vlaneseq
    %v792 = vshrl.u32 %v791, 7
    %v793 = vsub.s32 0, %v792
    %v794 = vrot.slane %v764, %v793
    %v795 = vlaneseq
    %v796 = vshrl.u32 %v795, 7
    %v797 = vsub.s32 0, %v796
    %v798 = vrot.slane %v766, %v797
    %vm807 = vcmp.le.f32.partialorder %v667, %v770
    %vm808 = vcmp.le.f32.partialorder %v674, %v774
    %vm809 = vcmp.le.f32.partialorder %v681, %v778
    %vm810 = vcmp.le.f32.partialorder %v688, %v782
    %vm811 = vcmp.le.f32.partialorder %v695, %v786
    %vm812 = vcmp.le.f32.partialorder %v702, %v790
    %vm813 = vcmp.le.f32.partialorder %v709, %v794
    %vm814 = vcmp.le.f32.partialorder %v716, %v798
    %v816 = vcombine.high %v660, %v660
    %v818 = vunpack.c.l.s4 1966171168
    %v819 = vunpack.c.0.s8 %v818
    %v820 = vlaneseq
    %v821 = vshrl.u32 %v820, 7
    %v822 = vsub.s32 %v819, %v821
    %v823 = vrot.slane %v660, %v822
    %v825 = vunpack.c.l.s4 1966171168
    %v826 = vunpack.c.0.s8 %v825
    %v827 = vlaneseq
    %v828 = vshrl.u32 %v827, 7
    %v829 = vsub.s32 %v826, %v828
    %v830 = vrot.slane %v816, %v829
    %v831 = vcombine.high %v823, %v823
    %v832 = vcombine.high %v830, %v830
    %v834 = vunpack.c.l.s4 1966171168
    %v835 = vunpack.c.0.s8 %v834
    %v836 = vlaneseq
    %v837 = vshrl.u32 %v836, 7
    %v838 = vsub.s32 %v835, %v837
    %v839 = vrot.slane %v823, %v838
    %v841 = vunpack.c.l.s4 1966171168
    %v842 = vunpack.c.0.s8 %v841
    %v843 = vlaneseq
    %v844 = vshrl.u32 %v843, 7
    %v845 = vsub.s32 %v842, %v844
    %v846 = vrot.slane %v830, %v845
    %v848 = vunpack.c.l.s4 1966171168
    %v849 = vunpack.c.0.s8 %v848
    %v850 = vlaneseq
    %v851 = vshrl.u32 %v850, 7
    %v852 = vsub.s32 %v849, %v851
    %v853 = vrot.slane %v831, %v852
    %v855 = vunpack.c.l.s4 1966171168
    %v856 = vunpack.c.0.s8 %v855
    %v857 = vlaneseq
    %v858 = vshrl.u32 %v857, 7
    %v859 = vsub.s32 %v856, %v858
    %v860 = vrot.slane %v832, %v859
    %v861 = vcombine.high %v839, %v839
    %v862 = vcombine.high %v846, %v846
    %v863 = vcombine.high %v853, %v853
    %v864 = vcombine.high %v860, %v860
    %v865 = vlaneseq
    %v866 = vshrl.u32 %v865, 7
    %v867 = vsub.s32 0, %v866
    %v868 = vrot.slane %v839, %v867
    %v869 = vlaneseq
    %v870 = vshrl.u32 %v869, 7
    %v871 = vsub.s32 0, %v870
    %v872 = vrot.slane %v853, %v871
    %v873 = vlaneseq
    %v874 = vshrl.u32 %v873, 7
    %v875 = vsub.s32 0, %v874
    %v876 = vrot.slane %v861, %v875
    %v877 = vlaneseq
    %v878 = vshrl.u32 %v877, 7
    %v879 = vsub.s32 0, %v878
    %v880 = vrot.slane %v863, %v879
    %v881 = vlaneseq
    %v882 = vshrl.u32 %v881, 7
    %v883 = vsub.s32 0, %v882
    %v884 = vrot.slane %v846, %v883
    %v885 = vlaneseq
    %v886 = vshrl.u32 %v885, 7
    %v887 = vsub.s32 0, %v886
    %v888 = vrot.slane %v860, %v887
    %v889 = vlaneseq
    %v890 = vshrl.u32 %v889, 7
    %v891 = vsub.s32 0, %v890
    %v892 = vrot.slane %v862, %v891
    %v893 = vlaneseq
    %v894 = vshrl.u32 %v893, 7
    %v895 = vsub.s32 0, %v894
    %v896 = vrot.slane %v864, %v895
    %v905 = vsel %vm807, %v868, 0.0
    %v906 = vsel %vm808, %v872, 0.0
    %v907 = vsel %vm809, %v876, 0.0
    %v908 = vsel %vm810, %v880, 0.0
    %v909 = vsel %vm811, %v884, 0.0
    %v910 = vsel %vm812, %v888, 0.0
    %v911 = vsel %vm813, %v892, 0.0
    %v912 = vsel %vm814, %v896, 0.0
    %v913 = vsel %vm653, %v905, 0.0
    %914 = vadd.xlane.f32.xlu0 %v913
    %v915 = vpop.xlane.xlu0 %914
    %v916 = vsel %vm653, %v906, 0.0
    %917 = vadd.xlane.f32.xlu0 %v916
    %v918 = vpop.xlane.xlu0 %917
    %v919 = vsel %vm653, %v907, 0.0
    %920 = vadd.xlane.f32.xlu0 %v919
    %v921 = vpop.xlane.xlu0 %920
    %v922 = vsel %vm653, %v908, 0.0
    %923 = vadd.xlane.f32.xlu0 %v922
    %v924 = vpop.xlane.xlu0 %923
    %v925 = vsel %vm653, %v909, 0.0
    %926 = vadd.xlane.f32.xlu0 %v925
    %v927 = vpop.xlane.xlu0 %926
    %v928 = vsel %vm653, %v910, 0.0
    %929 = vadd.xlane.f32.xlu0 %v928
    %v930 = vpop.xlane.xlu0 %929
    %v931 = vsel %vm653, %v911, 0.0
    %932 = vadd.xlane.f32.xlu0 %v931
    %v933 = vpop.xlane.xlu0 %932
    %v934 = vsel %vm653, %v912, 0.0
    %935 = vadd.xlane.f32.xlu0 %v934
    %v936 = vpop.xlane.xlu0 %935
    %v937 = vadd.f32 %v915, 0.0
    %v938 = vadd.f32 %v918, 0.0
    %v939 = vadd.f32 %v921, 0.0
    %v940 = vadd.f32 %v924, 0.0
    %v941 = vadd.f32 %v927, 0.0
    %v942 = vadd.f32 %v930, 0.0
    %v943 = vadd.f32 %v933, 0.0
    %v944 = vadd.f32 %v936, 0.0
    %v945 = vadd.f32 %v937, 1e-07
    %v946 = vadd.f32 %v938, 1e-07
    %v947 = vadd.f32 %v939, 1e-07
    %v948 = vadd.f32 %v940, 1e-07
    %v949 = vadd.f32 %v941, 1e-07
    %v950 = vadd.f32 %v942, 1e-07
    %v951 = vadd.f32 %v943, 1e-07
    %v952 = vadd.f32 %v944, 1e-07
    %v953 = vlog2.pop %v945
    %v954 = vmul.f32 %v953, 0.6931472
    %v955 = vlog2.pop %v946
    %v956 = vmul.f32 %v955, 0.6931472
    %v957 = vlog2.pop %v947
    %v958 = vmul.f32 %v957, 0.6931472
    %v959 = vlog2.pop %v948
    %v960 = vmul.f32 %v959, 0.6931472
    %v961 = vlog2.pop %v949
    %v962 = vmul.f32 %v961, 0.6931472
    %v963 = vlog2.pop %v950
    %v964 = vmul.f32 %v963, 0.6931472
    %v965 = vlog2.pop %v951
    %v966 = vmul.f32 %v965, 0.6931472
    %v967 = vlog2.pop %v952
    %v968 = vmul.f32 %v967, 0.6931472
    %v977 = vlaneseq
    %v978 = vshrl.u32 %v977, 7
    %v979 = vsub.s32 %v35, %v978
    %v980 = vrot.slane %v954, %v979
    %v981 = vlaneseq
    %v982 = vshrl.u32 %v981, 7
    %v983 = vsub.s32 %v35, %v982
    %v984 = vrot.slane %v956, %v983
    %v985 = vlaneseq
    %v986 = vshrl.u32 %v985, 7
    %v987 = vsub.s32 %v35, %v986
    %v988 = vrot.slane %v958, %v987
    %v989 = vlaneseq
    %v990 = vshrl.u32 %v989, 7
    %v991 = vsub.s32 %v35, %v990
    %v992 = vrot.slane %v960, %v991
    %v993 = vlaneseq
    %v994 = vshrl.u32 %v993, 7
    %v995 = vsub.s32 %v35, %v994
    %v996 = vrot.slane %v962, %v995
    %v997 = vlaneseq
    %v998 = vshrl.u32 %v997, 7
    %v999 = vsub.s32 %v35, %v998
    %v1000 = vrot.slane %v964, %v999
    %v1001 = vlaneseq
    %v1002 = vshrl.u32 %v1001, 7
    %v1003 = vsub.s32 %v35, %v1002
    %v1004 = vrot.slane %v966, %v1003
    %v1005 = vlaneseq
    %v1006 = vshrl.u32 %v1005, 7
    %v1007 = vsub.s32 %v35, %v1006
    %v1008 = vrot.slane %v968, %v1007
    %vm1009 = vcmask 1041409
    %v1010 = vsel %vm1009, %v984, %v980
    %vm1011 = vcmask 1042434
    %v1012 = vsel %vm1011, %v988, %v1010
    %vm1013 = vcmask 1043459
    %v1014 = vsel %vm1013, %v992, %v1012
    %vm1015 = vcmask 1044484
    %v1016 = vsel %vm1015, %v996, %v1014
    %vm1017 = vcmask 1045509
    %v1018 = vsel %vm1017, %v1000, %v1016
    %vm1019 = vcmask 1046534
    %v1020 = vsel %vm1019, %v1004, %v1018
    %vm1021 = vcmask 1047559
    %v1022 = vsel %vm1021, %v1008, %v1020
    %v1024 = vsub.f32 %v657, %v1022
    %v1025 = vsel %vm40, %v1024, 0.0
    %v1026 = vsel %vm653, %v1025, 0.0
    %1027 = vadd.xlane.f32.xlu0 %v1026
    %v1028 = vpop.xlane.xlu0 %1027
    %v1029 = vrot.slane %v1028, 4
    %v1030 = vadd.f32 %v1028, %v1029
    %v1031 = vrot.slane %v1030, 2
    %v1032 = vadd.f32 %v1030, %v1031
    %v1033 = vrot.slane %v1032, 1
    %v1034 = vadd.f32 %v1032, %v1033
    %s1035 = vtos %v1034
    %s1036 = sadd.f32 %s1035, 0.0
    %v1037 = vstv %s1036
    %1038 = vst [vmem:[#allocation2] sm:$0xff] %v1037
    // Predicated region
    $region22: #{tpu_custom_call.1} parent=1 // pred_check
      _
    $region23: #{tpu_custom_call.1} parent=1 // pred_check_branch
      %1040 = sbr.rel (0) target = $region25
    $region24: #{tpu_custom_call.1} parent=1 // pred_region
      %s1042 = ssub.s32 128, 128
      %1043 = vsyncadd [#allocation3], %s1042
      %s1045 = sshll.u32 [#allocation2], 4
      %s1046 = int_to_ptr.vmem [resolvable:$true] %s1045
      %1048 = dma.vmem_to_hbm [thread:$0]  %s1046, 128, %s5, [#allocation3]
    $region25: #{tpu_custom_call.1} parent=1 // pred_fallthru
      _
    // Predicated region
    $region26: #{tpu_custom_call.1} parent=1 // pred_check
      _
    $region27: #{tpu_custom_call.1} parent=1 // pred_check_branch
      %1050 = sbr.rel (0) target = $region29
    $region28: #{tpu_custom_call.1} parent=1 // pred_region
      %1051 = dma.done [#allocation3], 128
    $region29: #{tpu_custom_call.1} parent=1 // pred_fallthru
      _
    %1052 = vsyncpa [#allocation3], 1

</llo_original>
